<compile_context>
chip_gen: v5e
topology: v5e:2x2
jax: 0.10.0
libtpu: 0.0.40
codegen_flags: <defaults>
</compile_context>

<pallas_src>
import jax
import jax.numpy as jnp
from jax import lax
from jax.experimental import pallas as pl
from jax.experimental.pallas import tpu as pltpu

# ----- small synthetic config (shapes consistent with the module) -----
B, T = 2, 8
INPUT_DIM = 16          # embedding dim == LSTM input_size
H_DIMS = 32             # LSTM hidden size
CONFIG = dict(routeid_num=64, speed_num=16, dis_num=16)
NUM_EDGES = 32

LANE = 128


def _round_up(n, m=LANE):
    return ((n + m - 1) // m) * m


# ---------------------------------------------------------------------------
# Shared in-kernel LSTM recurrence (only h @ W_hh lives on the serial chain)
# ---------------------------------------------------------------------------
def _lstm_recurrence(xg_ref, whh_bf16, h0, c0, hall_ref):
    """xg_ref: (T*B, 4H) precomputed x@W_ih + bias (f32 VMEM scratch).
       whh_bf16: (H, 4H) bf16 value.  h0/c0: (B, H) f32 values.
       hall_ref: (T*B, H) f32 VMEM scratch receiving h_t for every step."""
    Bn, H = h0.shape
    Tn = hall_ref.shape[0] // Bn

    def step(t, carry):
        h, c = carry
        r0 = t * Bn
        gates = xg_ref[pl.ds(r0, Bn), :] + jnp.dot(
            h.astype(jnp.bfloat16), whh_bf16, preferred_element_type=jnp.float32)
        sg = jax.nn.sigmoid(gates)               # one EUP pass over all 4H lanes
        g_g = jnp.tanh(gates[:, 2 * H:3 * H])    # tanh only on the g-gate slice
        i_g = sg[:, 0 * H:1 * H]
        f_g = sg[:, 1 * H:2 * H]
        o_g = sg[:, 3 * H:4 * H]
        c_new = f_g * c + i_g * g_g
        h_new = o_g * jnp.tanh(c_new)
        hall_ref[pl.ds(r0, Bn), :] = h_new
        return (h_new, c_new)

    # T is static and small -> fully unroll so the LLO scheduler can overlap
    # the next step's elementwise work with the current MXU drain.
    lax.fori_loop(0, Tn, step, (h0, c0), unroll=True)


# ---------------------------------------------------------------------------
# Kernels
# ---------------------------------------------------------------------------
def _route_kernel(x_ref, neq_ref, tgt1h_ref, h0_ref, c0_ref,
                  wih_ref, whh_ref, b_ref, wout_ref, bout_ref,
                  out_ref, xg_ref, hall_ref):
    """x_ref   : (T*B, E)     f32   (time-major flattened embeddings)
       neq_ref : (T*B, Ed)    bf16  (source != label), 0/1
       tgt1h   : (Ed, Rp)     bf16  one-hot(target) padded to 128-lane multiple
       h0/c0   : (B, H)       f32
       wih     : (E, 4H)      bf16 ; whh : (H, 4H) bf16 ; b : (1, 4H) f32 (b_ih+b_hh)
       wout    : (H, Rp)      bf16 ; bout: (1, Rp) f32   (zero-padded lanes)
       out_ref : (T*B, Rp)    f32   (lane-dense slab; padding sliced in wrapper)
       xg_ref  : (T*B, 4H) f32 scratch ; hall_ref : (T*B, H) f32 scratch"""
    # 1) batched input projection for ALL timesteps (bias folded in) -- one MXU matmul
    xg_ref[...] = jnp.dot(x_ref[...].astype(jnp.bfloat16), wih_ref[...],
                          preferred_element_type=jnp.float32) + b_ref[...]

    # 2) serial recurrence (only h @ W_hh on the chain)
    _lstm_recurrence(xg_ref, whh_ref[...], h0_ref[...], c0_ref[...], hall_ref)

    # 3) batched output head + edge mask, single lane-dense slab store
    h_all = hall_ref[...].astype(jnp.bfloat16)                         # (T*B, H)
    out = jnp.dot(h_all, wout_ref[...],
                  preferred_element_type=jnp.float32) + bout_ref[...]  # (T*B, Rp)
    # scatter_add_ equivalent: mask[n, r] = sum_e [tgt[e]==r] * [src[e]!=label[n]]
    mask = jnp.dot(neq_ref[...], tgt1h_ref[...],
                   preferred_element_type=jnp.float32)                 # (T*B, Rp)
    out_ref[...] = out + (-9999999.0) * mask


def _move_kernel(x_ref, h0_ref, c0_ref, wih_ref, whh_ref, b_ref,
                 whead_ref, bhead_ref, out_ref, xg_ref, hall_ref):
    """x_ref : (T*B, E) f32 ; whead : (H, SDp) bf16 (fused speed|dis head, padded);
       out_ref : (T*B, SDp) f32 — split into speed / dis in the wrapper."""
    xg_ref[...] = jnp.dot(x_ref[...].astype(jnp.bfloat16), wih_ref[...],
                          preferred_element_type=jnp.float32) + b_ref[...]

    _lstm_recurrence(xg_ref, whh_ref[...], h0_ref[...], c0_ref[...], hall_ref)

    h_all = hall_ref[...].astype(jnp.bfloat16)
    out_ref[...] = jnp.dot(h_all, whead_ref[...],
                           preferred_element_type=jnp.float32) + bhead_ref[...]


# ---------------------------------------------------------------------------
# Wrapper (glue: embedding gather, transposes, weight prep/padding, mask one-hot)
# ---------------------------------------------------------------------------
def decoder_forward(params, vaetype, input_data, label, enc_hidden, init_state,
                    sub_graph_edges):
    batch = input_data.shape[0]
    seq = input_data.shape[1]
    H = params["w_hh"].shape[1]

    # dec_state = (enc_hidden.unsqueeze(0), init_state[1])
    h0 = enc_hidden.astype(jnp.float32)                 # (B, H)
    c0 = init_state[1][0].astype(jnp.float32)           # (B, H)

    # Weights kept PyTorch (out, in); transpose so kernels right-multiply.
    # bf16 for MXU operands; biases stay f32 (added post-accumulation).
    wih_t = jnp.transpose(params["w_ih"]).astype(jnp.bfloat16)    # (E, 4H)
    whh_t = jnp.transpose(params["w_hh"]).astype(jnp.bfloat16)    # (H, 4H)
    bias = (params["b_ih"] + params["b_hh"])[None, :].astype(jnp.float32)  # (1, 4H)

    vmem = pl.BlockSpec(memory_space=pltpu.MemorySpace.VMEM)

    if vaetype == "route":
        # embedding lookup (gather) kept in plain JAX glue
        emb = jnp.take(params["embedding"], label, axis=0)                 # (B, T, E)
        x_flat = jnp.transpose(emb, (1, 0, 2)).reshape(seq * batch, -1)
        x_flat = x_flat.astype(jnp.float32)                                # (T*B, E)

        lab_flat = jnp.transpose(label, (1, 0)).reshape(-1)                # (T*B,)
        src = sub_graph_edges[0]                                           # (Ed,)
        tgt = sub_graph_edges[1]                                           # (Ed,)
        R = params["w_route"].shape[0]
        Rp = _round_up(R)                                                  # lane-dense
        # 0/1 matrices are exact in bf16; the mask matmul accumulates in f32.
        neq = (lab_flat[:, None] != src[None, :]).astype(jnp.bfloat16)     # (T*B, Ed)
        tgt1h = (tgt[:, None] == jnp.arange(Rp, dtype=tgt.dtype)[None, :]
                 ).astype(jnp.bfloat16)                                    # (Ed, Rp)

        wout_t = jnp.transpose(params["w_route"]).astype(jnp.bfloat16)     # (H, R)
        wout_t = jnp.pad(wout_t, ((0, 0), (0, Rp - R)))                    # (H, Rp)
        bout = jnp.pad(params["b_route"].astype(jnp.float32),
                       (0, Rp - R))[None, :]                               # (1, Rp)

        out_flat = pl.pallas_call(
            _route_kernel,
            out_shape=jax.ShapeDtypeStruct((seq * batch, Rp), jnp.float32),
            in_specs=[vmem] * 10,
            out_specs=vmem,
            scratch_shapes=[pltpu.VMEM((seq * batch, 4 * H), jnp.float32),
                            pltpu.VMEM((seq * batch, H), jnp.float32)],
        )(x_flat, neq, tgt1h, h0, c0, wih_t, whh_t, bias, wout_t, bout)
        out_flat = out_flat[:, :R]
        return jnp.transpose(out_flat.reshape(seq, batch, R), (1, 0, 2))   # (B, T, R)

    elif vaetype == "move":
        # TODO(synk): PyTorch's move branch loops `for i in range(seq_len-1)` and is
        # undefined for seq_len<=1; a single pass reproduces the loop's (identical)
        # last iteration for seq_len>=2.
        x_flat = jnp.transpose(input_data, (1, 0, 2)).reshape(seq * batch, -1)
        x_flat = x_flat.astype(jnp.float32)                                # (T*B, E)

        S = params["w_speed"].shape[0]
        D = params["w_dis"].shape[0]
        SDp = _round_up(S + D)
        # fuse the two heads into one (H, S+D) weight / (1, S+D) bias, lane-padded
        whead = jnp.concatenate([jnp.transpose(params["w_speed"]),
                                 jnp.transpose(params["w_dis"])],
                                axis=1).astype(jnp.bfloat16)               # (H, S+D)
        whead = jnp.pad(whead, ((0, 0), (0, SDp - (S + D))))               # (H, SDp)
        bhead = jnp.pad(jnp.concatenate([params["b_speed"], params["b_dis"]]
                                        ).astype(jnp.float32),
                        (0, SDp - (S + D)))[None, :]                       # (1, SDp)

        head_flat = pl.pallas_call(
            _move_kernel,
            out_shape=jax.ShapeDtypeStruct((seq * batch, SDp), jnp.float32),
            in_specs=[vmem] * 8,
            out_specs=vmem,
            scratch_shapes=[pltpu.VMEM((seq * batch, 4 * H), jnp.float32),
                            pltpu.VMEM((seq * batch, H), jnp.float32)],
        )(x_flat, h0, c0, wih_t, whh_t, bias, whead, bhead)

        head_flat = head_flat[:, :S + D]
        head = jnp.transpose(head_flat.reshape(seq, batch, S + D), (1, 0, 2))
        return [head[..., :S], head[..., S:]]
    else:
        raise ValueError(vaetype)


# ---------------------------------------------------------------------------
# Pure-JAX reference (for validation)
# ---------------------------------------------------------------------------
def _lstm_ref(x, h0, c0, w_ih, w_hh, b_ih, b_hh):
    Bn, Tn, _ = x.shape
    H = h0.shape[1]
    h, c = h0, c0
    outs = []
    for t in range(Tn):
        gates = x[:, t, :] @ w_ih.T + b_ih + h @ w_hh.T + b_hh
        i_g = jax.nn.sigmoid(gates[:, 0 * H:1 * H])
        f_g = jax.nn.sigmoid(gates[:, 1 * H:2 * H])
        g_g = jnp.tanh(gates[:, 2 * H:3 * H])
        o_g = jax.nn.sigmoid(gates[:, 3 * H:4 * H])
        c = f_g * c + i_g * g_g
        h = o_g * jnp.tanh(c)
        outs.append(h)
    return jnp.stack(outs, axis=1)


def decoder_ref(params, vaetype, input_data, label, enc_hidden, init_state,
                sub_graph_edges):
    h0 = enc_hidden
    c0 = init_state[1][0]
    if vaetype == "route":
        emb = params["embedding"][label]
        xs = _lstm_ref(emb, h0, c0, params["w_ih"], params["w_hh"],
                       params["b_ih"], params["b_hh"])
        out = xs @ params["w_route"].T + params["b_route"]
        lab_flat = label.reshape(-1)
        src, tgt = sub_graph_edges[0], sub_graph_edges[1]
        neq = (src[None, :] != lab_flat[:, None]).astype(jnp.int32)
        mask = jnp.zeros((lab_flat.shape[0], CONFIG["routeid_num"]), jnp.int32)
        mask = mask.at[jnp.arange(lab_flat.shape[0])[:, None], tgt[None, :]].add(neq)
        mask = mask.reshape(label.shape[0], label.shape[1], -1)
        return out + (-9999999.0) * mask
    else:
        xs = _lstm_ref(input_data, h0, c0, params["w_ih"], params["w_hh"],
                       params["b_ih"], params["b_hh"])
        speed = xs @ params["w_speed"].T + params["b_speed"]
        dis = xs @ params["w_dis"].T + params["b_dis"]
        return [speed, dis]


# ---------------------------------------------------------------------------
if __name__ == "__main__":
    key = jax.random.PRNGKey(0)
    ks = jax.random.split(key, 16)
    s = 1.0 / jnp.sqrt(jnp.float32(H_DIMS))

    # deterministic synthetic parameters (shapes from Decoder.__init__)
    params = {
        "embedding": 0.1 * jax.random.normal(ks[0], (CONFIG["routeid_num"], INPUT_DIM), jnp.float32),
        "w_ih": jax.random.uniform(ks[1], (4 * H_DIMS, INPUT_DIM), jnp.float32, -s, s),
        "w_hh": jax.random.uniform(ks[2], (4 * H_DIMS, H_DIMS), jnp.float32, -s, s),
        "b_ih": jax.random.uniform(ks[3], (4 * H_DIMS,), jnp.float32, -s, s),
        "b_hh": jax.random.uniform(ks[4], (4 * H_DIMS,), jnp.float32, -s, s),
        "w_route": jax.random.uniform(ks[5], (CONFIG["routeid_num"], H_DIMS), jnp.float32, -s, s),
        "b_route": jax.random.uniform(ks[6], (CONFIG["routeid_num"],), jnp.float32, -s, s),
        "w_speed": jax.random.uniform(ks[7], (CONFIG["speed_num"], H_DIMS), jnp.float32, -s, s),
        "b_speed": jax.random.uniform(ks[8], (CONFIG["speed_num"],), jnp.float32, -s, s),
        "w_dis": jax.random.uniform(ks[9], (CONFIG["dis_num"], H_DIMS), jnp.float32, -s, s),
        "b_dis": jax.random.uniform(ks[10], (CONFIG["dis_num"],), jnp.float32, -s, s),
    }

    # deterministic synthetic inputs
    input_data = 0.1 * jax.random.normal(ks[11], (B, T, INPUT_DIM), jnp.float32)
    label = jax.random.randint(ks[12], (B, T), 0, CONFIG["routeid_num"], jnp.int32)
    enc_hidden = 0.1 * jax.random.normal(ks[13], (B, H_DIMS), jnp.float32)
    init_state = (jnp.zeros((1, B, H_DIMS), jnp.float32),
                  0.1 * jax.random.normal(ks[14], (1, B, H_DIMS), jnp.float32))
    sub_graph_edges = jax.random.randint(ks[15], (2, NUM_EDGES), 0,
                                         CONFIG["routeid_num"], jnp.int32)

    # --- run kernels ---
    out_route = decoder_forward(params, "route", input_data, label, enc_hidden,
                                init_state, sub_graph_edges)
    speed, dis = decoder_forward(params, "move", input_data, label, enc_hidden,
                                 init_state, sub_graph_edges)
    jax.block_until_ready((out_route, speed, dis))

    # --- validate against pure-JAX (f32) reference ---
    ref_route = decoder_ref(params, "route", input_data, label, enc_hidden,
                            init_state, sub_graph_edges)
    ref_speed, ref_dis = decoder_ref(params, "move", input_data, label,
                                     enc_hidden, init_state, sub_graph_edges)

    def close(a, b, atol=5e-2, rtol=5e-2):
        return bool(jnp.all(jnp.abs(a - b) <= atol + rtol * jnp.abs(b)))

    assert out_route.shape == (B, T, CONFIG["routeid_num"])
    assert speed.shape == (B, T, CONFIG["speed_num"])
    assert dis.shape == (B, T, CONFIG["dis_num"])
    assert close(out_route, ref_route)
    assert close(speed, ref_speed)
    assert close(dis, ref_dis)

    print("KERNEL_OK")
</pallas_src>

<mosaic_0001>
module attributes {stable_mosaic.version = 11 : i64} {
  func.func @_route_kernel(%arg0: memref<16x16xf32, #tpu.memory_space<vmem>>, %arg1: memref<16x32xbf16, #tpu.memory_space<vmem>>, %arg2: memref<32x128xbf16, #tpu.memory_space<vmem>>, %arg3: memref<2x32xf32, #tpu.memory_space<vmem>>, %arg4: memref<2x32xf32, #tpu.memory_space<vmem>>, %arg5: memref<16x128xbf16, #tpu.memory_space<vmem>>, %arg6: memref<32x128xbf16, #tpu.memory_space<vmem>>, %arg7: memref<1x128xf32, #tpu.memory_space<vmem>>, %arg8: memref<32x128xbf16, #tpu.memory_space<vmem>>, %arg9: memref<1x128xf32, #tpu.memory_space<vmem>>, %arg10: memref<16x128xf32, #tpu.memory_space<vmem>>, %arg11: memref<16x128xf32, #tpu.memory_space<vmem>>, %arg12: memref<16x32xf32, #tpu.memory_space<vmem>>) attributes {dimension_semantics = [], scalar_prefetch = 0 : i64, scratch_operands = 2 : i64, tpu.core_type = #tpu.core_type<tc>} {
    %c0 = arith.constant 0 : index
    %c0_0 = arith.constant 0 : index
    %0 = vector.load %arg0[%c0, %c0_0] : memref<16x16xf32, #tpu.memory_space<vmem>>, vector<16x16xf32>
    %1 = arith.truncf %0 : vector<16x16xf32> to vector<16x16xbf16>
    %c0_1 = arith.constant 0 : index
    %c0_2 = arith.constant 0 : index
    %2 = vector.load %arg5[%c0_1, %c0_2] : memref<16x128xbf16, #tpu.memory_space<vmem>>, vector<16x128xbf16>
    %cst = arith.constant dense<0.000000e+00> : vector<16x128xf32>
    %3 = tpu.matmul %1, %2, %cst {dimension_numbers = #tpu.dot_dimension_numbers<[1], [0], [0], [1], [0, 0, 1, 1], [], []>} : vector<16x16xbf16>, vector<16x128xbf16>, vector<16x128xf32> -> vector<16x128xf32>
    %c0_3 = arith.constant 0 : index
    %c0_4 = arith.constant 0 : index
    %4 = vector.load %arg7[%c0_3, %c0_4] : memref<1x128xf32, #tpu.memory_space<vmem>>, vector<1x128xf32>
    %5 = vector.broadcast %4 : vector<1x128xf32> to vector<16x128xf32>
    %6 = arith.addf %3, %5 : vector<16x128xf32>
    %c0_5 = arith.constant 0 : index
    %c0_6 = arith.constant 0 : index
    %7 = vector.load %arg11[%c0_5, %c0_6] : memref<16x128xf32, #tpu.memory_space<vmem>>, vector<16x128xf32>
    tpu.vector_store %arg11[%c0_5, %c0_6], %6 {strides = array<i32>} : memref<16x128xf32, #tpu.memory_space<vmem>>, vector<16x128xf32>,
    %c0_7 = arith.constant 0 : index
    %c0_8 = arith.constant 0 : index
    %8 = vector.load %arg6[%c0_7, %c0_8] : memref<32x128xbf16, #tpu.memory_space<vmem>>, vector<32x128xbf16>
    %c0_9 = arith.constant 0 : index
    %c0_10 = arith.constant 0 : index
    %9 = vector.load %arg3[%c0_9, %c0_10] : memref<2x32xf32, #tpu.memory_space<vmem>>, vector<2x32xf32>
    %c0_11 = arith.constant 0 : index
    %c0_12 = arith.constant 0 : index
    %10 = vector.load %arg4[%c0_11, %c0_12] : memref<2x32xf32, #tpu.memory_space<vmem>>, vector<2x32xf32>
    %c0_i32 = arith.constant 0 : i32
    %c2_i32 = arith.constant 2 : i32
    %11 = arith.muli %c0_i32, %c2_i32 : i32
    %12 = arith.index_cast %11 : i32 to index
    %c0_13 = arith.constant 0 : index
    %13 = vector.load %arg11[%12, %c0_13] : memref<16x128xf32, #tpu.memory_space<vmem>>, vector<2x128xf32>
    %14 = arith.truncf %9 : vector<2x32xf32> to vector<2x32xbf16>
    %cst_14 = arith.constant dense<0.000000e+00> : vector<2x128xf32>
    %15 = tpu.matmul %14, %8, %cst_14 {dimension_numbers = #tpu.dot_dimension_numbers<[1], [0], [0], [1], [0, 0, 1, 1], [], []>} : vector<2x32xbf16>, vector<32x128xbf16>, vector<2x128xf32> -> vector<2x128xf32>
    %16 = arith.addf %13, %15 : vector<2x128xf32>
    %17 = arith.negf %16 : vector<2x128xf32>
    %18 = math.exp %17 : vector<2x128xf32>
    %cst_15 = arith.constant 1.000000e+00 : f32
    %19 = vector.broadcast %cst_15 : f32 to vector<2x128xf32>
    %20 = arith.addf %19, %18 : vector<2x128xf32>
    %21 = arith.divf %19, %20 : vector<2x128xf32>
    %22 = vector.extract_strided_slice %16 {offsets = [0, 64], sizes = [2, 32], strides = [1, 1]} : vector<2x128xf32> to vector<2x32xf32>
    %23 = math.tanh %22 : vector<2x32xf32>
    %24 = vector.extract_strided_slice %21 {offsets = [0, 0], sizes = [2, 32], strides = [1, 1]} : vector<2x128xf32> to vector<2x32xf32>
    %25 = vector.extract_strided_slice %21 {offsets = [0, 32], sizes = [2, 32], strides = [1, 1]} : vector<2x128xf32> to vector<2x32xf32>
    %26 = vector.extract_strided_slice %21 {offsets = [0, 96], sizes = [2, 32], strides = [1, 1]} : vector<2x128xf32> to vector<2x32xf32>
    %27 = arith.mulf %25, %10 : vector<2x32xf32>
    %28 = arith.mulf %24, %23 : vector<2x32xf32>
    %29 = arith.addf %27, %28 : vector<2x32xf32>
    %30 = math.tanh %29 : vector<2x32xf32>
    %31 = arith.mulf %26, %30 : vector<2x32xf32>
    %32 = arith.index_cast %11 : i32 to index
    %c0_16 = arith.constant 0 : index
    %33 = vector.load %arg12[%32, %c0_16] : memref<16x32xf32, #tpu.memory_space<vmem>>, vector<2x32xf32>
    tpu.vector_store %arg12[%32, %c0_16], %31 {strides = array<i32>} : memref<16x32xf32, #tpu.memory_space<vmem>>, vector<2x32xf32>,
    %c1_i32 = arith.constant 1 : i32
    %c2_i32_17 = arith.constant 2 : i32
    %34 = arith.muli %c1_i32, %c2_i32_17 : i32
    %35 = arith.index_cast %34 : i32 to index
    %c0_18 = arith.constant 0 : index
    %36 = vector.load %arg11[%35, %c0_18] : memref<16x128xf32, #tpu.memory_space<vmem>>, vector<2x128xf32>
    %37 = arith.truncf %31 : vector<2x32xf32> to vector<2x32xbf16>
    %cst_19 = arith.constant dense<0.000000e+00> : vector<2x128xf32>
    %38 = tpu.matmul %37, %8, %cst_19 {dimension_numbers = #tpu.dot_dimension_numbers<[1], [0], [0], [1], [0, 0, 1, 1], [], []>} : vector<2x32xbf16>, vector<32x128xbf16>, vector<2x128xf32> -> vector<2x128xf32>
    %39 = arith.addf %36, %38 : vector<2x128xf32>
    %40 = arith.negf %39 : vector<2x128xf32>
    %41 = math.exp %40 : vector<2x128xf32>
    %cst_20 = arith.constant 1.000000e+00 : f32
    %42 = vector.broadcast %cst_20 : f32 to vector<2x128xf32>
    %43 = arith.addf %42, %41 : vector<2x128xf32>
    %44 = arith.divf %42, %43 : vector<2x128xf32>
    %45 = vector.extract_strided_slice %39 {offsets = [0, 64], sizes = [2, 32], strides = [1, 1]} : vector<2x128xf32> to vector<2x32xf32>
    %46 = math.tanh %45 : vector<2x32xf32>
    %47 = vector.extract_strided_slice %44 {offsets = [0, 0], sizes = [2, 32], strides = [1, 1]} : vector<2x128xf32> to vector<2x32xf32>
    %48 = vector.extract_strided_slice %44 {offsets = [0, 32], sizes = [2, 32], strides = [1, 1]} : vector<2x128xf32> to vector<2x32xf32>
    %49 = vector.extract_strided_slice %44 {offsets = [0, 96], sizes = [2, 32], strides = [1, 1]} : vector<2x128xf32> to vector<2x32xf32>
    %50 = arith.mulf %48, %29 : vector<2x32xf32>
    %51 = arith.mulf %47, %46 : vector<2x32xf32>
    %52 = arith.addf %50, %51 : vector<2x32xf32>
    %53 = math.tanh %52 : vector<2x32xf32>
    %54 = arith.mulf %49, %53 : vector<2x32xf32>
    %55 = arith.index_cast %34 : i32 to index
    %c0_21 = arith.constant 0 : index
    %56 = vector.load %arg12[%55, %c0_21] : memref<16x32xf32, #tpu.memory_space<vmem>>, vector<2x32xf32>
    tpu.vector_store %arg12[%55, %c0_21], %54 {strides = array<i32>} : memref<16x32xf32, #tpu.memory_space<vmem>>, vector<2x32xf32>,
    %c2_i32_22 = arith.constant 2 : i32
    %c2_i32_23 = arith.constant 2 : i32
    %57 = arith.muli %c2_i32_22, %c2_i32_23 : i32
    %58 = arith.index_cast %57 : i32 to index
    %c0_24 = arith.constant 0 : index
    %59 = vector.load %arg11[%58, %c0_24] : memref<16x128xf32, #tpu.memory_space<vmem>>, vector<2x128xf32>
    %60 = arith.truncf %54 : vector<2x32xf32> to vector<2x32xbf16>
    %cst_25 = arith.constant dense<0.000000e+00> : vector<2x128xf32>
    %61 = tpu.matmul %60, %8, %cst_25 {dimension_numbers = #tpu.dot_dimension_numbers<[1], [0], [0], [1], [0, 0, 1, 1], [], []>} : vector<2x32xbf16>, vector<32x128xbf16>, vector<2x128xf32> -> vector<2x128xf32>
    %62 = arith.addf %59, %61 : vector<2x128xf32>
    %63 = arith.negf %62 : vector<2x128xf32>
    %64 = math.exp %63 : vector<2x128xf32>
    %cst_26 = arith.constant 1.000000e+00 : f32
    %65 = vector.broadcast %cst_26 : f32 to vector<2x128xf32>
    %66 = arith.addf %65, %64 : vector<2x128xf32>
    %67 = arith.divf %65, %66 : vector<2x128xf32>
    %68 = vector.extract_strided_slice %62 {offsets = [0, 64], sizes = [2, 32], strides = [1, 1]} : vector<2x128xf32> to vector<2x32xf32>
    %69 = math.tanh %68 : vector<2x32xf32>
    %70 = vector.extract_strided_slice %67 {offsets = [0, 0], sizes = [2, 32], strides = [1, 1]} : vector<2x128xf32> to vector<2x32xf32>
    %71 = vector.extract_strided_slice %67 {offsets = [0, 32], sizes = [2, 32], strides = [1, 1]} : vector<2x128xf32> to vector<2x32xf32>
    %72 = vector.extract_strided_slice %67 {offsets = [0, 96], sizes = [2, 32], strides = [1, 1]} : vector<2x128xf32> to vector<2x32xf32>
    %73 = arith.mulf %71, %52 : vector<2x32xf32>
    %74 = arith.mulf %70, %69 : vector<2x32xf32>
    %75 = arith.addf %73, %74 : vector<2x32xf32>
    %76 = math.tanh %75 : vector<2x32xf32>
    %77 = arith.mulf %72, %76 : vector<2x32xf32>
    %78 = arith.index_cast %57 : i32 to index
    %c0_27 = arith.constant 0 : index
    %79 = vector.load %arg12[%78, %c0_27] : memref<16x32xf32, #tpu.memory_space<vmem>>, vector<2x32xf32>
    tpu.vector_store %arg12[%78, %c0_27], %77 {strides = array<i32>} : memref<16x32xf32, #tpu.memory_space<vmem>>, vector<2x32xf32>,
    %c3_i32 = arith.constant 3 : i32
    %c2_i32_28 = arith.constant 2 : i32
    %80 = arith.muli %c3_i32, %c2_i32_28 : i32
    %81 = arith.index_cast %80 : i32 to index
    %c0_29 = arith.constant 0 : index
    %82 = vector.load %arg11[%81, %c0_29] : memref<16x128xf32, #tpu.memory_space<vmem>>, vector<2x128xf32>
    %83 = arith.truncf %77 : vector<2x32xf32> to vector<2x32xbf16>
    %cst_30 = arith.constant dense<0.000000e+00> : vector<2x128xf32>
    %84 = tpu.matmul %83, %8, %cst_30 {dimension_numbers = #tpu.dot_dimension_numbers<[1], [0], [0], [1], [0, 0, 1, 1], [], []>} : vector<2x32xbf16>, vector<32x128xbf16>, vector<2x128xf32> -> vector<2x128xf32>
    %85 = arith.addf %82, %84 : vector<2x128xf32>
    %86 = arith.negf %85 : vector<2x128xf32>
    %87 = math.exp %86 : vector<2x128xf32>
    %cst_31 = arith.constant 1.000000e+00 : f32
    %88 = vector.broadcast %cst_31 : f32 to vector<2x128xf32>
    %89 = arith.addf %88, %87 : vector<2x128xf32>
    %90 = arith.divf %88, %89 : vector<2x128xf32>
    %91 = vector.extract_strided_slice %85 {offsets = [0, 64], sizes = [2, 32], strides = [1, 1]} : vector<2x128xf32> to vector<2x32xf32>
    %92 = math.tanh %91 : vector<2x32xf32>
    %93 = vector.extract_strided_slice %90 {offsets = [0, 0], sizes = [2, 32], strides = [1, 1]} : vector<2x128xf32> to vector<2x32xf32>
    %94 = vector.extract_strided_slice %90 {offsets = [0, 32], sizes = [2, 32], strides = [1, 1]} : vector<2x128xf32> to vector<2x32xf32>
    %95 = vector.extract_strided_slice %90 {offsets = [0, 96], sizes = [2, 32], strides = [1, 1]} : vector<2x128xf32> to vector<2x32xf32>
    %96 = arith.mulf %94, %75 : vector<2x32xf32>
    %97 = arith.mulf %93, %92 : vector<2x32xf32>
    %98 = arith.addf %96, %97 : vector<2x32xf32>
    %99 = math.tanh %98 : vector<2x32xf32>
    %100 = arith.mulf %95, %99 : vector<2x32xf32>
    %101 = arith.index_cast %80 : i32 to index
    %c0_32 = arith.constant 0 : index
    %102 = vector.load %arg12[%101, %c0_32] : memref<16x32xf32, #tpu.memory_space<vmem>>, vector<2x32xf32>
    tpu.vector_store %arg12[%101, %c0_32], %100 {strides = array<i32>} : memref<16x32xf32, #tpu.memory_space<vmem>>, vector<2x32xf32>,
    %c4_i32 = arith.constant 4 : i32
    %c2_i32_33 = arith.constant 2 : i32
    %103 = arith.muli %c4_i32, %c2_i32_33 : i32
    %104 = arith.index_cast %103 : i32 to index
    %c0_34 = arith.constant 0 : index
    %105 = vector.load %arg11[%104, %c0_34] : memref<16x128xf32, #tpu.memory_space<vmem>>, vector<2x128xf32>
    %106 = arith.truncf %100 : vector<2x32xf32> to vector<2x32xbf16>
    %cst_35 = arith.constant dense<0.000000e+00> : vector<2x128xf32>
    %107 = tpu.matmul %106, %8, %cst_35 {dimension_numbers = #tpu.dot_dimension_numbers<[1], [0], [0], [1], [0, 0, 1, 1], [], []>} : vector<2x32xbf16>, vector<32x128xbf16>, vector<2x128xf32> -> vector<2x128xf32>
    %108 = arith.addf %105, %107 : vector<2x128xf32>
    %109 = arith.negf %108 : vector<2x128xf32>
    %110 = math.exp %109 : vector<2x128xf32>
    %cst_36 = arith.constant 1.000000e+00 : f32
    %111 = vector.broadcast %cst_36 : f32 to vector<2x128xf32>
    %112 = arith.addf %111, %110 : vector<2x128xf32>
    %113 = arith.divf %111, %112 : vector<2x128xf32>
    %114 = vector.extract_strided_slice %108 {offsets = [0, 64], sizes = [2, 32], strides = [1, 1]} : vector<2x128xf32> to vector<2x32xf32>
    %115 = math.tanh %114 : vector<2x32xf32>
    %116 = vector.extract_strided_slice %113 {offsets = [0, 0], sizes = [2, 32], strides = [1, 1]} : vector<2x128xf32> to vector<2x32xf32>
    %117 = vector.extract_strided_slice %113 {offsets = [0, 32], sizes = [2, 32], strides = [1, 1]} : vector<2x128xf32> to vector<2x32xf32>
    %118 = vector.extract_strided_slice %113 {offsets = [0, 96], sizes = [2, 32], strides = [1, 1]} : vector<2x128xf32> to vector<2x32xf32>
    %119 = arith.mulf %117, %98 : vector<2x32xf32>
    %120 = arith.mulf %116, %115 : vector<2x32xf32>
    %121 = arith.addf %119, %120 : vector<2x32xf32>
    %122 = math.tanh %121 : vector<2x32xf32>
    %123 = arith.mulf %118, %122 : vector<2x32xf32>
    %124 = arith.index_cast %103 : i32 to index
    %c0_37 = arith.constant 0 : index
    %125 = vector.load %arg12[%124, %c0_37] : memref<16x32xf32, #tpu.memory_space<vmem>>, vector<2x32xf32>
    tpu.vector_store %arg12[%124, %c0_37], %123 {strides = array<i32>} : memref<16x32xf32, #tpu.memory_space<vmem>>, vector<2x32xf32>,
    %c5_i32 = arith.constant 5 : i32
    %c2_i32_38 = arith.constant 2 : i32
    %126 = arith.muli %c5_i32, %c2_i32_38 : i32
    %127 = arith.index_cast %126 : i32 to index
    %c0_39 = arith.constant 0 : index
    %128 = vector.load %arg11[%127, %c0_39] : memref<16x128xf32, #tpu.memory_space<vmem>>, vector<2x128xf32>
    %129 = arith.truncf %123 : vector<2x32xf32> to vector<2x32xbf16>
    %cst_40 = arith.constant dense<0.000000e+00> : vector<2x128xf32>
    %130 = tpu.matmul %129, %8, %cst_40 {dimension_numbers = #tpu.dot_dimension_numbers<[1], [0], [0], [1], [0, 0, 1, 1], [], []>} : vector<2x32xbf16>, vector<32x128xbf16>, vector<2x128xf32> -> vector<2x128xf32>
    %131 = arith.addf %128, %130 : vector<2x128xf32>
    %132 = arith.negf %131 : vector<2x128xf32>
    %133 = math.exp %132 : vector<2x128xf32>
    %cst_41 = arith.constant 1.000000e+00 : f32
    %134 = vector.broadcast %cst_41 : f32 to vector<2x128xf32>
    %135 = arith.addf %134, %133 : vector<2x128xf32>
    %136 = arith.divf %134, %135 : vector<2x128xf32>
    %137 = vector.extract_strided_slice %131 {offsets = [0, 64], sizes = [2, 32], strides = [1, 1]} : vector<2x128xf32> to vector<2x32xf32>
    %138 = math.tanh %137 : vector<2x32xf32>
    %139 = vector.extract_strided_slice %136 {offsets = [0, 0], sizes = [2, 32], strides = [1, 1]} : vector<2x128xf32> to vector<2x32xf32>
    %140 = vector.extract_strided_slice %136 {offsets = [0, 32], sizes = [2, 32], strides = [1, 1]} : vector<2x128xf32> to vector<2x32xf32>
    %141 = vector.extract_strided_slice %136 {offsets = [0, 96], sizes = [2, 32], strides = [1, 1]} : vector<2x128xf32> to vector<2x32xf32>
    %142 = arith.mulf %140, %121 : vector<2x32xf32>
    %143 = arith.mulf %139, %138 : vector<2x32xf32>
    %144 = arith.addf %142, %143 : vector<2x32xf32>
    %145 = math.tanh %144 : vector<2x32xf32>
    %146 = arith.mulf %141, %145 : vector<2x32xf32>
    %147 = arith.index_cast %126 : i32 to index
    %c0_42 = arith.constant 0 : index
    %148 = vector.load %arg12[%147, %c0_42] : memref<16x32xf32, #tpu.memory_space<vmem>>, vector<2x32xf32>
    tpu.vector_store %arg12[%147, %c0_42], %146 {strides = array<i32>} : memref<16x32xf32, #tpu.memory_space<vmem>>, vector<2x32xf32>,
    %c6_i32 = arith.constant 6 : i32
    %c2_i32_43 = arith.constant 2 : i32
    %149 = arith.muli %c6_i32, %c2_i32_43 : i32
    %150 = arith.index_cast %149 : i32 to index
    %c0_44 = arith.constant 0 : index
    %151 = vector.load %arg11[%150, %c0_44] : memref<16x128xf32, #tpu.memory_space<vmem>>, vector<2x128xf32>
    %152 = arith.truncf %146 : vector<2x32xf32> to vector<2x32xbf16>
    %cst_45 = arith.constant dense<0.000000e+00> : vector<2x128xf32>
    %153 = tpu.matmul %152, %8, %cst_45 {dimension_numbers = #tpu.dot_dimension_numbers<[1], [0], [0], [1], [0, 0, 1, 1], [], []>} : vector<2x32xbf16>, vector<32x128xbf16>, vector<2x128xf32> -> vector<2x128xf32>
    %154 = arith.addf %151, %153 : vector<2x128xf32>
    %155 = arith.negf %154 : vector<2x128xf32>
    %156 = math.exp %155 : vector<2x128xf32>
    %cst_46 = arith.constant 1.000000e+00 : f32
    %157 = vector.broadcast %cst_46 : f32 to vector<2x128xf32>
    %158 = arith.addf %157, %156 : vector<2x128xf32>
    %159 = arith.divf %157, %158 : vector<2x128xf32>
    %160 = vector.extract_strided_slice %154 {offsets = [0, 64], sizes = [2, 32], strides = [1, 1]} : vector<2x128xf32> to vector<2x32xf32>
    %161 = math.tanh %160 : vector<2x32xf32>
    %162 = vector.extract_strided_slice %159 {offsets = [0, 0], sizes = [2, 32], strides = [1, 1]} : vector<2x128xf32> to vector<2x32xf32>
    %163 = vector.extract_strided_slice %159 {offsets = [0, 32], sizes = [2, 32], strides = [1, 1]} : vector<2x128xf32> to vector<2x32xf32>
    %164 = vector.extract_strided_slice %159 {offsets = [0, 96], sizes = [2, 32], strides = [1, 1]} : vector<2x128xf32> to vector<2x32xf32>
    %165 = arith.mulf %163, %144 : vector<2x32xf32>
    %166 = arith.mulf %162, %161 : vector<2x32xf32>
    %167 = arith.addf %165, %166 : vector<2x32xf32>
    %168 = math.tanh %167 : vector<2x32xf32>
    %169 = arith.mulf %164, %168 : vector<2x32xf32>
    %170 = arith.index_cast %149 : i32 to index
    %c0_47 = arith.constant 0 : index
    %171 = vector.load %arg12[%170, %c0_47] : memref<16x32xf32, #tpu.memory_space<vmem>>, vector<2x32xf32>
    tpu.vector_store %arg12[%170, %c0_47], %169 {strides = array<i32>} : memref<16x32xf32, #tpu.memory_space<vmem>>, vector<2x32xf32>,
    %c7_i32 = arith.constant 7 : i32
    %c2_i32_48 = arith.constant 2 : i32
    %172 = arith.muli %c7_i32, %c2_i32_48 : i32
    %173 = arith.index_cast %172 : i32 to index
    %c0_49 = arith.constant 0 : index
    %174 = vector.load %arg11[%173, %c0_49] : memref<16x128xf32, #tpu.memory_space<vmem>>, vector<2x128xf32>
    %175 = arith.truncf %169 : vector<2x32xf32> to vector<2x32xbf16>
    %cst_50 = arith.constant dense<0.000000e+00> : vector<2x128xf32>
    %176 = tpu.matmul %175, %8, %cst_50 {dimension_numbers = #tpu.dot_dimension_numbers<[1], [0], [0], [1], [0, 0, 1, 1], [], []>} : vector<2x32xbf16>, vector<32x128xbf16>, vector<2x128xf32> -> vector<2x128xf32>
    %177 = arith.addf %174, %176 : vector<2x128xf32>
    %178 = arith.negf %177 : vector<2x128xf32>
    %179 = math.exp %178 : vector<2x128xf32>
    %cst_51 = arith.constant 1.000000e+00 : f32
    %180 = vector.broadcast %cst_51 : f32 to vector<2x128xf32>
    %181 = arith.addf %180, %179 : vector<2x128xf32>
    %182 = arith.divf %180, %181 : vector<2x128xf32>
    %183 = vector.extract_strided_slice %177 {offsets = [0, 64], sizes = [2, 32], strides = [1, 1]} : vector<2x128xf32> to vector<2x32xf32>
    %184 = math.tanh %183 : vector<2x32xf32>
    %185 = vector.extract_strided_slice %182 {offsets = [0, 0], sizes = [2, 32], strides = [1, 1]} : vector<2x128xf32> to vector<2x32xf32>
    %186 = vector.extract_strided_slice %182 {offsets = [0, 32], sizes = [2, 32], strides = [1, 1]} : vector<2x128xf32> to vector<2x32xf32>
    %187 = vector.extract_strided_slice %182 {offsets = [0, 96], sizes = [2, 32], strides = [1, 1]} : vector<2x128xf32> to vector<2x32xf32>
    %188 = arith.mulf %186, %167 : vector<2x32xf32>
    %189 = arith.mulf %185, %184 : vector<2x32xf32>
    %190 = arith.addf %188, %189 : vector<2x32xf32>
    %191 = math.tanh %190 : vector<2x32xf32>
    %192 = arith.mulf %187, %191 : vector<2x32xf32>
    %193 = arith.index_cast %172 : i32 to index
    %c0_52 = arith.constant 0 : index
    %194 = vector.load %arg12[%193, %c0_52] : memref<16x32xf32, #tpu.memory_space<vmem>>, vector<2x32xf32>
    tpu.vector_store %arg12[%193, %c0_52], %192 {strides = array<i32>} : memref<16x32xf32, #tpu.memory_space<vmem>>, vector<2x32xf32>,
    %c8_i32 = arith.constant 8 : i32
    %c0_53 = arith.constant 0 : index
    %c0_54 = arith.constant 0 : index
    %195 = vector.load %arg12[%c0_53, %c0_54] : memref<16x32xf32, #tpu.memory_space<vmem>>, vector<16x32xf32>
    %196 = arith.truncf %195 : vector<16x32xf32> to vector<16x32xbf16>
    %c0_55 = arith.constant 0 : index
    %c0_56 = arith.constant 0 : index
    %197 = vector.load %arg8[%c0_55, %c0_56] : memref<32x128xbf16, #tpu.memory_space<vmem>>, vector<32x128xbf16>
    %cst_57 = arith.constant dense<0.000000e+00> : vector<16x128xf32>
    %198 = tpu.matmul %196, %197, %cst_57 {dimension_numbers = #tpu.dot_dimension_numbers<[1], [0], [0], [1], [0, 0, 1, 1], [], []>} : vector<16x32xbf16>, vector<32x128xbf16>, vector<16x128xf32> -> vector<16x128xf32>
    %c0_58 = arith.constant 0 : index
    %c0_59 = arith.constant 0 : index
    %199 = vector.load %arg9[%c0_58, %c0_59] : memref<1x128xf32, #tpu.memory_space<vmem>>, vector<1x128xf32>
    %200 = vector.broadcast %199 : vector<1x128xf32> to vector<16x128xf32>
    %201 = arith.addf %198, %200 : vector<16x128xf32>
    %c0_60 = arith.constant 0 : index
    %c0_61 = arith.constant 0 : index
    %202 = vector.load %arg1[%c0_60, %c0_61] : memref<16x32xbf16, #tpu.memory_space<vmem>>, vector<16x32xbf16>
    %c0_62 = arith.constant 0 : index
    %c0_63 = arith.constant 0 : index
    %203 = vector.load %arg2[%c0_62, %c0_63] : memref<32x128xbf16, #tpu.memory_space<vmem>>, vector<32x128xbf16>
    %cst_64 = arith.constant dense<0.000000e+00> : vector<16x128xf32>
    %204 = tpu.matmul %202, %203, %cst_64 {dimension_numbers = #tpu.dot_dimension_numbers<[1], [0], [0], [1], [0, 0, 1, 1], [], []>} : vector<16x32xbf16>, vector<32x128xbf16>, vector<16x128xf32> -> vector<16x128xf32>
    %cst_65 = arith.constant 0xCB18967F : f32
    %205 = vector.broadcast %cst_65 : f32 to vector<16x128xf32>
    %206 = arith.mulf %205, %204 : vector<16x128xf32>
    %207 = arith.addf %201, %206 : vector<16x128xf32>
    %c0_66 = arith.constant 0 : index
    %c0_67 = arith.constant 0 : index
    %208 = vector.load %arg10[%c0_66, %c0_67] : memref<16x128xf32, #tpu.memory_space<vmem>>, vector<16x128xf32>
    tpu.vector_store %arg10[%c0_66, %c0_67], %207 {strides = array<i32>} : memref<16x128xf32, #tpu.memory_space<vmem>>, vector<16x128xf32>,
    return
  }
}

</mosaic_0001>

<llo_original>
// kernel: tpu_custom_call.1
$region0: #{tpu_custom_call.1}
  #allocation0 [shape = 'u32[]', space=smem, size = 0x4, offset = 0x4, fixed_abs, tag = 'smem constant byte address 0x4 - core index']
  #allocation1 [shape = 'u32[72,128]{1,0:T(1,128)}', space=vmem, size = 0x9000, scoped, tag = 'internal scratch']
  #allocation2 [shape = 'f32[16,128]{1,0:T(8,128)}', space=vmem, size = 0x2000, scoped, tag = 'scratch operand']
  #allocation3 [shape = 'f32[16,32]{1,0:T(8,128)}', space=vmem, size = 0x2000, scoped, tag = 'scratch operand']
  %s0 = inlined_call_operand.hbm [shape: f32[16,16], index: 0, kind: input, shape index: {}]
  %s1 = inlined_call_operand.hbm [shape: bf16[16,32], index: 1, kind: input, shape index: {}]
  %s2 = inlined_call_operand.hbm [shape: bf16[32,128], index: 2, kind: input, shape index: {}]
  %s3 = inlined_call_operand.vmem [shape: f32[2,32], index: 3, kind: input, shape index: {}]
  %s4 = inlined_call_operand.hbm [shape: f32[2,32], index: 4, kind: input, shape index: {}]
  %s5 = inlined_call_operand.hbm [shape: bf16[16,128], index: 5, kind: input, shape index: {}]
  %s6 = inlined_call_operand.hbm [shape: bf16[32,128], index: 6, kind: input, shape index: {}]
  %s7 = inlined_call_operand.vmem [shape: f32[1,128], index: 7, kind: input, shape index: {}]
  %s8 = inlined_call_operand.hbm [shape: bf16[32,128], index: 8, kind: input, shape index: {}]
  %s9 = inlined_call_operand.vmem [shape: f32[1,128], index: 9, kind: input, shape index: {}]
  %s10 = inlined_call_operand.hbm [shape: f32[16,128], index: 10, kind: output, shape index: {}]
  %s11 = sld [smem:[#allocation0]]
  $region78: #{tpu_custom_call.1} parent=0
    _
  %s13 = ssub.s32 1, %s11
  %s14 = scalar_select 0, %s13, %s11
  $region1: #{tpu_custom_call.1} parent=0
    #allocation4 [shape = 'u8[8192]{0}', space=vmem, size = 0x2000, scoped, tag = 'input window, operand 0, single buffered']
    #allocation5 [shape = 's32[1]{0}', space=sflag, size = 0x4, scoped, tag = 'scoped memory for tpu_custom_call.1']
    #allocation6 [shape = 's32[1]{0}', space=sflag, size = 0x4, scoped, tag = 'scoped memory for tpu_custom_call.1']
    #allocation7 [shape = 'u8[4096]{0}', space=vmem, size = 0x1000, scoped, tag = 'input window, operand 1, single buffered']
    #allocation8 [shape = 's32[1]{0}', space=sflag, size = 0x4, scoped, tag = 'scoped memory for tpu_custom_call.1']
    #allocation9 [shape = 'u8[8192]{0}', space=vmem, size = 0x2000, scoped, tag = 'input window, operand 2, single buffered']
    #allocation10 [shape = 'u8[1024]{0}', space=vmem, size = 0x400, scoped, tag = 'input window, operand 4, single buffered']
    #allocation11 [shape = 's32[1]{0}', space=sflag, size = 0x4, scoped, tag = 'scoped memory for tpu_custom_call.1']
    #allocation12 [shape = 'u8[4096]{0}', space=vmem, size = 0x1000, scoped, tag = 'input window, operand 5, single buffered']
    #allocation13 [shape = 'u8[8192]{0}', space=vmem, size = 0x2000, scoped, tag = 'input window, operand 6, single buffered']
    #allocation14 [shape = 's32[1]{0}', space=sflag, size = 0x4, scoped, tag = 'scoped memory for tpu_custom_call.1']
    #allocation15 [shape = 'u8[8192]{0}', space=vmem, size = 0x2000, scoped, tag = 'input window, operand 8, single buffered']
    #allocation16 [shape = 'u8[8192]{0}', space=vmem, size = 0x2000, scoped, tag = 'output window, operand 0, single buffered']
    %15 = vsyncpa [#allocation5], 0
    %16 = vsyncpa [#allocation8], 0
    %17 = vsyncpa [#allocation11], 0
    %18 = vsyncpa [#allocation14], 0
    %19 = vsyncpa [#allocation6], 0
    // Predicated region
    $region2: #{tpu_custom_call.1} parent=1 // pred_check
      _
    $region3: #{tpu_custom_call.1} parent=1 // pred_check_branch
      %21 = sbr.rel (0) target = $region5
    $region4: #{tpu_custom_call.1} parent=1 // pred_region
      %23 = vsyncadd [#allocation5], 0
      %s24 = sshll.u32 %s0, 4
      %s25 = int_to_ptr.hbm [resolvable:$true] %s24
      %s26 = sshll.u32 [#allocation4], 4
      %s27 = int_to_ptr.vmem [resolvable:$true] %s26
      %32 = dma.hbm_to_vmem [thread:$0]  %s25, 256, %s27, [#allocation5], 128, 128, 8
    $region5: #{tpu_custom_call.1} parent=1 // pred_fallthru
      _
    // Predicated region
    $region6: #{tpu_custom_call.1} parent=1 // pred_check
      _
    $region7: #{tpu_custom_call.1} parent=1 // pred_check_branch
      %34 = sbr.rel (0) target = $region9
    $region8: #{tpu_custom_call.1} parent=1 // pred_region
      %36 = vsyncadd [#allocation8], 0
      %s37 = sshll.u32 %s1, 4
      %s38 = int_to_ptr.hbm [resolvable:$true] %s37
      %s39 = sshll.u32 [#allocation7], 4
      %s40 = int_to_ptr.vmem [resolvable:$true] %s39
      %45 = dma.hbm_to_vmem [thread:$0]  %s38, 128, %s40, [#allocation8], 64, 64, 4
    $region9: #{tpu_custom_call.1} parent=1 // pred_fallthru
      _
    // Predicated region
    $region10: #{tpu_custom_call.1} parent=1 // pred_check
      _
    $region11: #{tpu_custom_call.1} parent=1 // pred_check_branch
      %47 = sbr.rel (0) target = $region13
    $region12: #{tpu_custom_call.1} parent=1 // pred_region
      %49 = vsyncadd [#allocation8], 0
      %s50 = sshll.u32 %s2, 4
      %s51 = int_to_ptr.hbm [resolvable:$true] %s50
      %s52 = sshll.u32 [#allocation9], 4
      %s53 = int_to_ptr.vmem [resolvable:$true] %s52
      %58 = dma.hbm_to_vmem [thread:$0]  %s51, 256, %s53, [#allocation8], 64, 64, 4
    $region13: #{tpu_custom_call.1} parent=1 // pred_fallthru
      _
    // Predicated region
    $region14: #{tpu_custom_call.1} parent=1 // pred_check
      _
    $region15: #{tpu_custom_call.1} parent=1 // pred_check_branch
      %60 = sbr.rel (0) target = $region17
    $region16: #{tpu_custom_call.1} parent=1 // pred_region
      _
    $region17: #{tpu_custom_call.1} parent=1 // pred_fallthru
      _
    // Predicated region
    $region18: #{tpu_custom_call.1} parent=1 // pred_check
      _
    $region19: #{tpu_custom_call.1} parent=1 // pred_check_branch
      %62 = sbr.rel (0) target = $region21
    $region20: #{tpu_custom_call.1} parent=1 // pred_region
      %64 = vsyncadd [#allocation11], 0
      %s66 = sshll.u32 %s4, 4
      %s67 = int_to_ptr.hbm [resolvable:$true] %s66
      %s68 = sshll.u32 [#allocation10], 4
      %s69 = int_to_ptr.vmem [resolvable:$true] %s68
      %71 = dma.hbm_to_vmem [thread:$0]  %s67, 32, %s69, [#allocation11]
    $region21: #{tpu_custom_call.1} parent=1 // pred_fallthru
      _
    // Predicated region
    $region22: #{tpu_custom_call.1} parent=1 // pred_check
      _
    $region23: #{tpu_custom_call.1} parent=1 // pred_check_branch
      %73 = sbr.rel (0) target = $region25
    $region24: #{tpu_custom_call.1} parent=1 // pred_region
      %75 = vsyncadd [#allocation11], 0
      %s76 = sshll.u32 %s5, 4
      %s77 = int_to_ptr.hbm [resolvable:$true] %s76
      %s78 = sshll.u32 [#allocation12], 4
      %s79 = int_to_ptr.vmem [resolvable:$true] %s78
      %84 = dma.hbm_to_vmem [thread:$0]  %s77, 128, %s79, [#allocation11], 64, 64, 4
    $region25: #{tpu_custom_call.1} parent=1 // pred_fallthru
      _
    // Predicated region
    $region26: #{tpu_custom_call.1} parent=1 // pred_check
      _
    $region27: #{tpu_custom_call.1} parent=1 // pred_check_branch
      %86 = sbr.rel (0) target = $region29
    $region28: #{tpu_custom_call.1} parent=1 // pred_region
      %88 = vsyncadd [#allocation14], 0
      %s89 = sshll.u32 %s6, 4
      %s90 = int_to_ptr.hbm [resolvable:$true] %s89
      %s91 = sshll.u32 [#allocation13], 4
      %s92 = int_to_ptr.vmem [resolvable:$true] %s91
      %97 = dma.hbm_to_vmem [thread:$0]  %s90, 256, %s92, [#allocation14], 64, 64, 4
    $region29: #{tpu_custom_call.1} parent=1 // pred_fallthru
      _
    // Predicated region
    $region30: #{tpu_custom_call.1} parent=1 // pred_check
      _
    $region31: #{tpu_custom_call.1} parent=1 // pred_check_branch
      %99 = sbr.rel (0) target = $region33
    $region32: #{tpu_custom_call.1} parent=1 // pred_region
      _
    $region33: #{tpu_custom_call.1} parent=1 // pred_fallthru
      _
    // Predicated region
    $region34: #{tpu_custom_call.1} parent=1 // pred_check
      _
    $region35: #{tpu_custom_call.1} parent=1 // pred_check_branch
      %101 = sbr.rel (0) target = $region37
    $region36: #{tpu_custom_call.1} parent=1 // pred_region
      %103 = vsyncadd [#allocation14], 0
      %s104 = sshll.u32 %s8, 4
      %s105 = int_to_ptr.hbm [resolvable:$true] %s104
      %s106 = sshll.u32 [#allocation15], 4
      %s107 = int_to_ptr.vmem [resolvable:$true] %s106
      %112 = dma.hbm_to_vmem [thread:$0]  %s105, 256, %s107, [#allocation14], 64, 64, 4
    $region37: #{tpu_custom_call.1} parent=1 // pred_fallthru
      _
    // Predicated region
    $region38: #{tpu_custom_call.1} parent=1 // pred_check
      _
    $region39: #{tpu_custom_call.1} parent=1 // pred_check_branch
      %114 = sbr.rel (0) target = $region41
    $region40: #{tpu_custom_call.1} parent=1 // pred_region
      _
    $region41: #{tpu_custom_call.1} parent=1 // pred_fallthru
      _
    // Predicated region
    $region42: #{tpu_custom_call.1} parent=1 // pred_check
      _
    $region43: #{tpu_custom_call.1} parent=1 // pred_check_branch
      %116 = sbr.rel (0) target = $region45
    $region44: #{tpu_custom_call.1} parent=1 // pred_region
      %118 = dma.done [#allocation5], 256
    $region45: #{tpu_custom_call.1} parent=1 // pred_fallthru
      _
    // Predicated region
    $region46: #{tpu_custom_call.1} parent=1 // pred_check
      _
    $region47: #{tpu_custom_call.1} parent=1 // pred_check_branch
      %120 = sbr.rel (0) target = $region49
    $region48: #{tpu_custom_call.1} parent=1 // pred_region
      %122 = dma.done [#allocation8], 128
    $region49: #{tpu_custom_call.1} parent=1 // pred_fallthru
      _
    // Predicated region
    $region50: #{tpu_custom_call.1} parent=1 // pred_check
      _
    $region51: #{tpu_custom_call.1} parent=1 // pred_check_branch
      %124 = sbr.rel (0) target = $region53
    $region52: #{tpu_custom_call.1} parent=1 // pred_region
      %126 = dma.done [#allocation8], 256
    $region53: #{tpu_custom_call.1} parent=1 // pred_fallthru
      _
    // Predicated region
    $region54: #{tpu_custom_call.1} parent=1 // pred_check
      _
    $region55: #{tpu_custom_call.1} parent=1 // pred_check_branch
      %128 = sbr.rel (0) target = $region57
    $region56: #{tpu_custom_call.1} parent=1 // pred_region
      %130 = dma.done [#allocation11], 32
    $region57: #{tpu_custom_call.1} parent=1 // pred_fallthru
      _
    // Predicated region
    $region58: #{tpu_custom_call.1} parent=1 // pred_check
      _
    $region59: #{tpu_custom_call.1} parent=1 // pred_check_branch
      %132 = sbr.rel (0) target = $region61
    $region60: #{tpu_custom_call.1} parent=1 // pred_region
      %134 = dma.done [#allocation11], 128
    $region61: #{tpu_custom_call.1} parent=1 // pred_fallthru
      _
    // Predicated region
    $region62: #{tpu_custom_call.1} parent=1 // pred_check
      _
    $region63: #{tpu_custom_call.1} parent=1 // pred_check_branch
      %136 = sbr.rel (0) target = $region65
    $region64: #{tpu_custom_call.1} parent=1 // pred_region
      %138 = dma.done [#allocation14], 256
    $region65: #{tpu_custom_call.1} parent=1 // pred_fallthru
      _
    // Predicated region
    $region66: #{tpu_custom_call.1} parent=1 // pred_check
      _
    $region67: #{tpu_custom_call.1} parent=1 // pred_check_branch
      %140 = sbr.rel (0) target = $region69
    $region68: #{tpu_custom_call.1} parent=1 // pred_region
      %142 = dma.done [#allocation14], 256
    $region69: #{tpu_custom_call.1} parent=1 // pred_fallthru
      _
    %v144 = vld [vmem:[#allocation4] sm:$0xff]
    %v145 = vld [vmem:[#allocation4 + $0x8] sm:$0xff]
    %v146 = vpack.c.bf16 %v145, %v144
    %v147 = vld [vmem:[#allocation12] sm:$0xf]
    %v148 = vld [vmem:[#allocation12 + $0x4] sm:$0xf]
    %v149 = vld [vmem:[%s7] sm:$0x1]
    %v151 = vperm.slane %v149, 0
    %v155 = vunpack.c.l.b16 %v147
    %v156 = vunpack.c.l.b16 %v148
    %v157 = vpack.c.b16 %v156, %v155
    %vm159 = vcmask 130048
    %v161 = vsel %vm159, %v146, 0
    %163 = vmatpush.bf16.msra.mxu0 0
    %164 = vmatpush.bf16.msra.mxu0 0
    %165 = vmatpush.bf16.msra.mxu0 0
    %166 = vmatpush.bf16.msra.mxu0 0
    %167 = vmatpush.bf16.msra.mxu0 0
    %168 = vmatpush.bf16.msra.mxu0 0
    %169 = vmatpush.bf16.msra.mxu0 0
    %170 = vmatpush.bf16.msra.mxu0 %v157
    %171 = vmatmul.bf16.gmra.mxu0 %v161
    %v172 = vpop.f32.mrf.mxu0
    %v173 = vadd.f32 %v151, %v172
    %v174 = vpop.f32.mrf.mxu0
    %v175 = vadd.f32 %v151, %v174
    %176 = vdwg.mxu0
    %177 = vst [vmem:[#allocation2] sm:$0xff] %v173
    %178 = vst [vmem:[#allocation2 + $0x8] sm:$0xff] %v175
    %v179 = vld [vmem:[#allocation13] sm:$0xf]
    %v180 = vld [vmem:[#allocation13 + $0x4] sm:$0xf]
    %v181 = vld [vmem:[#allocation13 + $0x8] sm:$0xf]
    %v182 = vld [vmem:[#allocation13 + $0xc] sm:$0xf]
    %v183 = vld [vmem:[%s3] sm:$0x3]
    %v184 = vld [vmem:[#allocation10] sm:$0x3]
    %v185 = vld [vmem:[#allocation2] sm:$0x3]
    %v186 = vpack.c.bf16 %v183, %v183
    %v191 = vunpack.c.l.b16 %v179
    %v192 = vunpack.c.l.b16 %v180
    %v193 = vunpack.c.l.b16 %v181
    %v194 = vunpack.c.l.b16 %v182
    %v195 = vpack.c.b16 %v192, %v191
    %v196 = vpack.c.b16 %v194, %v193
    %vm199 = vcmask 261120
    %v201 = vsel %vm199, %v186, 0
    %203 = vmatpush.bf16.msra.mxu0 0
    %204 = vmatpush.bf16.msra.mxu0 0
    %205 = vmatpush.bf16.msra.mxu0 0
    %206 = vmatpush.bf16.msra.mxu0 0
    %207 = vmatpush.bf16.msra.mxu0 0
    %208 = vmatpush.bf16.msra.mxu0 0
    %209 = vmatpush.bf16.msra.mxu0 %v196
    %210 = vmatpush.bf16.msra.mxu0 %v195
    %211 = vmatmul.bf16.gmra.mxu0 %v201
    %v212 = vpop.f32.mrf.mxu0
    %v213 = vadd.f32 0.0, %v212
    %v214 = vpop.f32.mrf.mxu0
    %215 = vdwg.mxu0
    %v216 = vadd.f32 %v185, %v213
    %v217 = vxor.u32 %v216, 2147483648
    %v218 = vmul.f32 %v217, 1.442695
    %v219 = vpow.pop %v218
    %v220 = vadd.f32 %v219, 1.0
    %v221 = vrcp.pop %v220
    %v222 = vmul.f32 %v220, %v221
    %v223 = vsub.f32 1.0, %v222
    %v224 = vmul.f32 %v221, %v223
    %v225 = vadd.f32 %v221, %v224
    %vm226 = vweird.f32 %v220
    %vm227 = vweird.f32 %v221
    %vm228 = vmor %vm226, %vm227
    %v229 = vsel %vm228, %v221, %v225
    %v230 = vand.u32 2147483647, %v220
    %vm231 = vcmp.eq.f32.partialorder %v230, 8.507059e+37
    %v232 = vand.u32 %v220, 2147483648
    %v233 = vor.u32 1.1754944e-38, %v232
    %v234 = vsel %vm231, %v233, %v229
    %v235 = vmul.f32 1.0, %v234
    %v236 = vtanh.pop %v216
    %238 = vrot.lane.b32.xlu0 %v184, 32
    %v239 = vpop.permute.xlu0 %238
    %v241 = vmul.f32 %v235, %v239
    %243 = vrot.lane.b32.xlu0 %v236, 64
    %v244 = vpop.permute.xlu0 %243
    %v246 = vmul.f32 %v235, %v244
    %248 = vrot.lane.b32.xlu0 %v246, 32
    %v249 = vpop.permute.xlu0 %248
    %v251 = vadd.f32 %v241, %v249
    %v252 = vtanh.pop %v251
    %254 = vrot.lane.b32.xlu0 %v252, 64
    %v255 = vpop.permute.xlu0 %254
    %v257 = vmul.f32 %v235, %v255
    %259 = vrot.lane.b32.xlu0 %v257, 32
    %v260 = vpop.permute.xlu0 %259
    %vm262 = vcmask 254976
    %263 = vst.msk [vmem:[#allocation3] sm:$0x3] %vm262, %v260
    %v264 = vld [vmem:[#allocation2 + $0x2] sm:$0x3]
    %v265 = vpack.c.bf16 %v257, %v257
    %267 = vrot.lane.b32.xlu0 %v265, 32
    %v268 = vpop.permute.xlu0 %267
    %v270 = vsel %vm199, %v268, 0
    %272 = vmatpush.bf16.msra.mxu0 0
    %273 = vmatpush.bf16.msra.mxu0 0
    %274 = vmatpush.bf16.msra.mxu0 0
    %275 = vmatpush.bf16.msra.mxu0 0
    %276 = vmatpush.bf16.msra.mxu0 0
    %277 = vmatpush.bf16.msra.mxu0 0
    %278 = vmatpush.bf16.msra.mxu0 %v196
    %279 = vmatpush.bf16.msra.mxu0 %v195
    %280 = vmatmul.bf16.gmra.mxu0 %v270
    %v281 = vpop.f32.mrf.mxu0
    %v282 = vadd.f32 0.0, %v281
    %v283 = vpop.f32.mrf.mxu0
    %284 = vdwg.mxu0
    %v285 = vadd.f32 %v264, %v282
    %v286 = vxor.u32 %v285, 2147483648
    %v287 = vmul.f32 %v286, 1.442695
    %v288 = vpow.pop %v287
    %v289 = vadd.f32 %v288, 1.0
    %v290 = vrcp.pop %v289
    %v291 = vmul.f32 %v289, %v290
    %v292 = vsub.f32 1.0, %v291
    %v293 = vmul.f32 %v290, %v292
    %v294 = vadd.f32 %v290, %v293
    %vm295 = vweird.f32 %v289
    %vm296 = vweird.f32 %v290
    %vm297 = vmor %vm295, %vm296
    %v298 = vsel %vm297, %v290, %v294
    %v299 = vand.u32 2147483647, %v289
    %vm300 = vcmp.eq.f32.partialorder %v299, 8.507059e+37
    %v301 = vand.u32 %v289, 2147483648
    %v302 = vor.u32 1.1754944e-38, %v301
    %v303 = vsel %vm300, %v302, %v298
    %v304 = vmul.f32 1.0, %v303
    %v305 = vtanh.pop %v285
    %v306 = vmul.f32 %v304, %v251
    %308 = vrot.lane.b32.xlu0 %v305, 64
    %v309 = vpop.permute.xlu0 %308
    %v311 = vmul.f32 %v304, %v309
    %313 = vrot.lane.b32.xlu0 %v311, 32
    %v314 = vpop.permute.xlu0 %313
    %v316 = vadd.f32 %v306, %v314
    %v317 = vtanh.pop %v316
    %319 = vrot.lane.b32.xlu0 %v317, 64
    %v320 = vpop.permute.xlu0 %319
    %v322 = vmul.f32 %v304, %v320
    %324 = vrot.lane.b32.xlu0 %v322, 32
    %v325 = vpop.permute.xlu0 %324
    %327 = vst.msk [vmem:[#allocation3 + $0x2] sm:$0x3] %vm262, %v325
    %v328 = vld [vmem:[#allocation2 + $0x4] sm:$0x3]
    %v329 = vpack.c.bf16 %v322, %v322
    %331 = vrot.lane.b32.xlu0 %v329, 32
    %v332 = vpop.permute.xlu0 %331
    %v334 = vsel %vm199, %v332, 0
    %336 = vmatpush.bf16.msra.mxu0 0
    %337 = vmatpush.bf16.msra.mxu0 0
    %338 = vmatpush.bf16.msra.mxu0 0
    %339 = vmatpush.bf16.msra.mxu0 0
    %340 = vmatpush.bf16.msra.mxu0 0
    %341 = vmatpush.bf16.msra.mxu0 0
    %342 = vmatpush.bf16.msra.mxu0 %v196
    %343 = vmatpush.bf16.msra.mxu0 %v195
    %344 = vmatmul.bf16.gmra.mxu0 %v334
    %v345 = vpop.f32.mrf.mxu0
    %v346 = vadd.f32 0.0, %v345
    %v347 = vpop.f32.mrf.mxu0
    %348 = vdwg.mxu0
    %v349 = vadd.f32 %v328, %v346
    %v350 = vxor.u32 %v349, 2147483648
    %v351 = vmul.f32 %v350, 1.442695
    %v352 = vpow.pop %v351
    %v353 = vadd.f32 %v352, 1.0
    %v354 = vrcp.pop %v353
    %v355 = vmul.f32 %v353, %v354
    %v356 = vsub.f32 1.0, %v355
    %v357 = vmul.f32 %v354, %v356
    %v358 = vadd.f32 %v354, %v357
    %vm359 = vweird.f32 %v353
    %vm360 = vweird.f32 %v354
    %vm361 = vmor %vm359, %vm360
    %v362 = vsel %vm361, %v354, %v358
    %v363 = vand.u32 2147483647, %v353
    %vm364 = vcmp.eq.f32.partialorder %v363, 8.507059e+37
    %v365 = vand.u32 %v353, 2147483648
    %v366 = vor.u32 1.1754944e-38, %v365
    %v367 = vsel %vm364, %v366, %v362
    %v368 = vmul.f32 1.0, %v367
    %v369 = vtanh.pop %v349
    %v370 = vmul.f32 %v368, %v316
    %372 = vrot.lane.b32.xlu0 %v369, 64
    %v373 = vpop.permute.xlu0 %372
    %v375 = vmul.f32 %v368, %v373
    %377 = vrot.lane.b32.xlu0 %v375, 32
    %v378 = vpop.permute.xlu0 %377
    %v380 = vadd.f32 %v370, %v378
    %v381 = vtanh.pop %v380
    %383 = vrot.lane.b32.xlu0 %v381, 64
    %v384 = vpop.permute.xlu0 %383
    %v386 = vmul.f32 %v368, %v384
    %388 = vrot.lane.b32.xlu0 %v386, 32
    %v389 = vpop.permute.xlu0 %388
    %391 = vst.msk [vmem:[#allocation3 + $0x4] sm:$0x3] %vm262, %v389
    %v392 = vld [vmem:[#allocation2 + $0x6] sm:$0x3]
    %v393 = vpack.c.bf16 %v386, %v386
    %395 = vrot.lane.b32.xlu0 %v393, 32
    %v396 = vpop.permute.xlu0 %395
    %v398 = vsel %vm199, %v396, 0
    %400 = vmatpush.bf16.msra.mxu0 0
    %401 = vmatpush.bf16.msra.mxu0 0
    %402 = vmatpush.bf16.msra.mxu0 0
    %403 = vmatpush.bf16.msra.mxu0 0
    %404 = vmatpush.bf16.msra.mxu0 0
    %405 = vmatpush.bf16.msra.mxu0 0
    %406 = vmatpush.bf16.msra.mxu0 %v196
    %407 = vmatpush.bf16.msra.mxu0 %v195
    %408 = vmatmul.bf16.gmra.mxu0 %v398
    %v409 = vpop.f32.mrf.mxu0
    %v410 = vadd.f32 0.0, %v409
    %v411 = vpop.f32.mrf.mxu0
    %412 = vdwg.mxu0
    %v413 = vadd.f32 %v392, %v410
    %v414 = vxor.u32 %v413, 2147483648
    %v415 = vmul.f32 %v414, 1.442695
    %v416 = vpow.pop %v415
    %v417 = vadd.f32 %v416, 1.0
    %v418 = vrcp.pop %v417
    %v419 = vmul.f32 %v417, %v418
    %v420 = vsub.f32 1.0, %v419
    %v421 = vmul.f32 %v418, %v420
    %v422 = vadd.f32 %v418, %v421
    %vm423 = vweird.f32 %v417
    %vm424 = vweird.f32 %v418
    %vm425 = vmor %vm423, %vm424
    %v426 = vsel %vm425, %v418, %v422
    %v427 = vand.u32 2147483647, %v417
    %vm428 = vcmp.eq.f32.partialorder %v427, 8.507059e+37
    %v429 = vand.u32 %v417, 2147483648
    %v430 = vor.u32 1.1754944e-38, %v429
    %v431 = vsel %vm428, %v430, %v426
    %v432 = vmul.f32 1.0, %v431
    %v433 = vtanh.pop %v413
    %v434 = vmul.f32 %v432, %v380
    %436 = vrot.lane.b32.xlu0 %v433, 64
    %v437 = vpop.permute.xlu0 %436
    %v439 = vmul.f32 %v432, %v437
    %441 = vrot.lane.b32.xlu0 %v439, 32
    %v442 = vpop.permute.xlu0 %441
    %v444 = vadd.f32 %v434, %v442
    %v445 = vtanh.pop %v444
    %447 = vrot.lane.b32.xlu0 %v445, 64
    %v448 = vpop.permute.xlu0 %447
    %v450 = vmul.f32 %v432, %v448
    %452 = vrot.lane.b32.xlu0 %v450, 32
    %v453 = vpop.permute.xlu0 %452
    %455 = vst.msk [vmem:[#allocation3 + $0x6] sm:$0x3] %vm262, %v453
    %v456 = vld [vmem:[#allocation2 + $0x8] sm:$0x3]
    %v457 = vpack.c.bf16 %v450, %v450
    %459 = vrot.lane.b32.xlu0 %v457, 32
    %v460 = vpop.permute.xlu0 %459
    %v462 = vsel %vm199, %v460, 0
    %464 = vmatpush.bf16.msra.mxu0 0
    %465 = vmatpush.bf16.msra.mxu0 0
    %466 = vmatpush.bf16.msra.mxu0 0
    %467 = vmatpush.bf16.msra.mxu0 0
    %468 = vmatpush.bf16.msra.mxu0 0
    %469 = vmatpush.bf16.msra.mxu0 0
    %470 = vmatpush.bf16.msra.mxu0 %v196
    %471 = vmatpush.bf16.msra.mxu0 %v195
    %472 = vmatmul.bf16.gmra.mxu0 %v462
    %v473 = vpop.f32.mrf.mxu0
    %v474 = vadd.f32 0.0, %v473
    %v475 = vpop.f32.mrf.mxu0
    %476 = vdwg.mxu0
    %v477 = vadd.f32 %v456, %v474
    %v478 = vxor.u32 %v477, 2147483648
    %v479 = vmul.f32 %v478, 1.442695
    %v480 = vpow.pop %v479
    %v481 = vadd.f32 %v480, 1.0
    %v482 = vrcp.pop %v481
    %v483 = vmul.f32 %v481, %v482
    %v484 = vsub.f32 1.0, %v483
    %v485 = vmul.f32 %v482, %v484
    %v486 = vadd.f32 %v482, %v485
    %vm487 = vweird.f32 %v481
    %vm488 = vweird.f32 %v482
    %vm489 = vmor %vm487, %vm488
    %v490 = vsel %vm489, %v482, %v486
    %v491 = vand.u32 2147483647, %v481
    %vm492 = vcmp.eq.f32.partialorder %v491, 8.507059e+37
    %v493 = vand.u32 %v481, 2147483648
    %v494 = vor.u32 1.1754944e-38, %v493
    %v495 = vsel %vm492, %v494, %v490
    %v496 = vmul.f32 1.0, %v495
    %v497 = vtanh.pop %v477
    %v498 = vmul.f32 %v496, %v444
    %500 = vrot.lane.b32.xlu0 %v497, 64
    %v501 = vpop.permute.xlu0 %500
    %v503 = vmul.f32 %v496, %v501
    %505 = vrot.lane.b32.xlu0 %v503, 32
    %v506 = vpop.permute.xlu0 %505
    %v508 = vadd.f32 %v498, %v506
    %v509 = vtanh.pop %v508
    %511 = vrot.lane.b32.xlu0 %v509, 64
    %v512 = vpop.permute.xlu0 %511
    %v514 = vmul.f32 %v496, %v512
    %516 = vrot.lane.b32.xlu0 %v514, 32
    %v517 = vpop.permute.xlu0 %516
    %519 = vst.msk [vmem:[#allocation3 + $0x8] sm:$0x3] %vm262, %v517
    %v520 = vld [vmem:[#allocation2 + $0xa] sm:$0x3]
    %v521 = vpack.c.bf16 %v514, %v514
    %523 = vrot.lane.b32.xlu0 %v521, 32
    %v524 = vpop.permute.xlu0 %523
    %v526 = vsel %vm199, %v524, 0
    %528 = vmatpush.bf16.msra.mxu0 0
    %529 = vmatpush.bf16.msra.mxu0 0
    %530 = vmatpush.bf16.msra.mxu0 0
    %531 = vmatpush.bf16.msra.mxu0 0
    %532 = vmatpush.bf16.msra.mxu0 0
    %533 = vmatpush.bf16.msra.mxu0 0
    %534 = vmatpush.bf16.msra.mxu0 %v196
    %535 = vmatpush.bf16.msra.mxu0 %v195
    %536 = vmatmul.bf16.gmra.mxu0 %v526
    %v537 = vpop.f32.mrf.mxu0
    %v538 = vadd.f32 0.0, %v537
    %v539 = vpop.f32.mrf.mxu0
    %540 = vdwg.mxu0
    %v541 = vadd.f32 %v520, %v538
    %v542 = vxor.u32 %v541, 2147483648
    %v543 = vmul.f32 %v542, 1.442695
    %v544 = vpow.pop %v543
    %v545 = vadd.f32 %v544, 1.0
    %v546 = vrcp.pop %v545
    %v547 = vmul.f32 %v545, %v546
    %v548 = vsub.f32 1.0, %v547
    %v549 = vmul.f32 %v546, %v548
    %v550 = vadd.f32 %v546, %v549
    %vm551 = vweird.f32 %v545
    %vm552 = vweird.f32 %v546
    %vm553 = vmor %vm551, %vm552
    %v554 = vsel %vm553, %v546, %v550
    %v555 = vand.u32 2147483647, %v545
    %vm556 = vcmp.eq.f32.partialorder %v555, 8.507059e+37
    %v557 = vand.u32 %v545, 2147483648
    %v558 = vor.u32 1.1754944e-38, %v557
    %v559 = vsel %vm556, %v558, %v554
    %v560 = vmul.f32 1.0, %v559
    %v561 = vtanh.pop %v541
    %v562 = vmul.f32 %v560, %v508
    %564 = vrot.lane.b32.xlu0 %v561, 64
    %v565 = vpop.permute.xlu0 %564
    %v567 = vmul.f32 %v560, %v565
    %569 = vrot.lane.b32.xlu0 %v567, 32
    %v570 = vpop.permute.xlu0 %569
    %v572 = vadd.f32 %v562, %v570
    %v573 = vtanh.pop %v572
    %575 = vrot.lane.b32.xlu0 %v573, 64
    %v576 = vpop.permute.xlu0 %575
    %v578 = vmul.f32 %v560, %v576
    %580 = vrot.lane.b32.xlu0 %v578, 32
    %v581 = vpop.permute.xlu0 %580
    %583 = vst.msk [vmem:[#allocation3 + $0xa] sm:$0x3] %vm262, %v581
    %v584 = vld [vmem:[#allocation2 + $0xc] sm:$0x3]
    %v585 = vpack.c.bf16 %v578, %v578
    %587 = vrot.lane.b32.xlu0 %v585, 32
    %v588 = vpop.permute.xlu0 %587
    %v590 = vsel %vm199, %v588, 0
    %592 = vmatpush.bf16.msra.mxu0 0
    %593 = vmatpush.bf16.msra.mxu0 0
    %594 = vmatpush.bf16.msra.mxu0 0
    %595 = vmatpush.bf16.msra.mxu0 0
    %596 = vmatpush.bf16.msra.mxu0 0
    %597 = vmatpush.bf16.msra.mxu0 0
    %598 = vmatpush.bf16.msra.mxu0 %v196
    %599 = vmatpush.bf16.msra.mxu0 %v195
    %600 = vmatmul.bf16.gmra.mxu0 %v590
    %v601 = vpop.f32.mrf.mxu0
    %v602 = vadd.f32 0.0, %v601
    %v603 = vpop.f32.mrf.mxu0
    %604 = vdwg.mxu0
    %v605 = vadd.f32 %v584, %v602
    %v606 = vxor.u32 %v605, 2147483648
    %v607 = vmul.f32 %v606, 1.442695
    %v608 = vpow.pop %v607
    %v609 = vadd.f32 %v608, 1.0
    %v610 = vrcp.pop %v609
    %v611 = vmul.f32 %v609, %v610
    %v612 = vsub.f32 1.0, %v611
    %v613 = vmul.f32 %v610, %v612
    %v614 = vadd.f32 %v610, %v613
    %vm615 = vweird.f32 %v609
    %vm616 = vweird.f32 %v610
    %vm617 = vmor %vm615, %vm616
    %v618 = vsel %vm617, %v610, %v614
    %v619 = vand.u32 2147483647, %v609
    %vm620 = vcmp.eq.f32.partialorder %v619, 8.507059e+37
    %v621 = vand.u32 %v609, 2147483648
    %v622 = vor.u32 1.1754944e-38, %v621
    %v623 = vsel %vm620, %v622, %v618
    %v624 = vmul.f32 1.0, %v623
    %v625 = vtanh.pop %v605
    %v626 = vmul.f32 %v624, %v572
    %628 = vrot.lane.b32.xlu0 %v625, 64
    %v629 = vpop.permute.xlu0 %628
    %v631 = vmul.f32 %v624, %v629
    %633 = vrot.lane.b32.xlu0 %v631, 32
    %v634 = vpop.permute.xlu0 %633
    %v636 = vadd.f32 %v626, %v634
    %v637 = vtanh.pop %v636
    %639 = vrot.lane.b32.xlu0 %v637, 64
    %v640 = vpop.permute.xlu0 %639
    %v642 = vmul.f32 %v624, %v640
    %644 = vrot.lane.b32.xlu0 %v642, 32
    %v645 = vpop.permute.xlu0 %644
    %647 = vst.msk [vmem:[#allocation3 + $0xc] sm:$0x3] %vm262, %v645
    %v648 = vld [vmem:[#allocation2 + $0xe] sm:$0x3]
    %v649 = vpack.c.bf16 %v642, %v642
    %651 = vrot.lane.b32.xlu0 %v649, 32
    %v652 = vpop.permute.xlu0 %651
    %v654 = vsel %vm199, %v652, 0
    %656 = vmatpush.bf16.msra.mxu0 0
    %657 = vmatpush.bf16.msra.mxu0 0
    %658 = vmatpush.bf16.msra.mxu0 0
    %659 = vmatpush.bf16.msra.mxu0 0
    %660 = vmatpush.bf16.msra.mxu0 0
    %661 = vmatpush.bf16.msra.mxu0 0
    %662 = vmatpush.bf16.msra.mxu0 %v196
    %663 = vmatpush.bf16.msra.mxu0 %v195
    %664 = vmatmul.bf16.gmra.mxu0 %v654
    %v665 = vpop.f32.mrf.mxu0
    %v666 = vadd.f32 0.0, %v665
    %v667 = vpop.f32.mrf.mxu0
    %668 = vdwg.mxu0
    %v669 = vadd.f32 %v648, %v666
    %v670 = vxor.u32 %v669, 2147483648
    %v671 = vmul.f32 %v670, 1.442695
    %v672 = vpow.pop %v671
    %v673 = vadd.f32 %v672, 1.0
    %v674 = vrcp.pop %v673
    %v675 = vmul.f32 %v673, %v674
    %v676 = vsub.f32 1.0, %v675
    %v677 = vmul.f32 %v674, %v676
    %v678 = vadd.f32 %v674, %v677
    %vm679 = vweird.f32 %v673
    %vm680 = vweird.f32 %v674
    %vm681 = vmor %vm679, %vm680
    %v682 = vsel %vm681, %v674, %v678
    %v683 = vand.u32 2147483647, %v673
    %vm684 = vcmp.eq.f32.partialorder %v683, 8.507059e+37
    %v685 = vand.u32 %v673, 2147483648
    %v686 = vor.u32 1.1754944e-38, %v685
    %v687 = vsel %vm684, %v686, %v682
    %v688 = vmul.f32 1.0, %v687
    %v689 = vtanh.pop %v669
    %v690 = vmul.f32 %v688, %v636
    %692 = vrot.lane.b32.xlu0 %v689, 64
    %v693 = vpop.permute.xlu0 %692
    %v695 = vmul.f32 %v688, %v693
    %697 = vrot.lane.b32.xlu0 %v695, 32
    %v698 = vpop.permute.xlu0 %697
    %v700 = vadd.f32 %v690, %v698
    %v701 = vtanh.pop %v700
    %703 = vrot.lane.b32.xlu0 %v701, 64
    %v704 = vpop.permute.xlu0 %703
    %v706 = vmul.f32 %v688, %v704
    %708 = vrot.lane.b32.xlu0 %v706, 32
    %v709 = vpop.permute.xlu0 %708
    %711 = vst.msk [vmem:[#allocation3 + $0xe] sm:$0x3] %vm262, %v709
    %v712 = vld [vmem:[#allocation3] sm:$0xff]
    %v713 = vld [vmem:[#allocation3 + $0x8] sm:$0xff]
    %v714 = vpack.c.bf16 %v713, %v712
    %v715 = vld [vmem:[#allocation15] sm:$0xf]
    %v716 = vld [vmem:[#allocation15 + $0x4] sm:$0xf]
    %v717 = vld [vmem:[#allocation15 + $0x8] sm:$0xf]
    %v718 = vld [vmem:[#allocation15 + $0xc] sm:$0xf]
    %v719 = vld [vmem:[%s9] sm:$0x1]
    %v721 = vperm.slane %v719, 0
    %v727 = vunpack.c.l.b16 %v715
    %v728 = vunpack.c.l.b16 %v716
    %v729 = vunpack.c.l.b16 %v717
    %v730 = vunpack.c.l.b16 %v718
    %v731 = vpack.c.b16 %v728, %v727
    %v732 = vpack.c.b16 %v730, %v729
    %v736 = vsel %vm199, %v714, 0
    %738 = vmatpush.bf16.msra.mxu0 0
    %739 = vmatpush.bf16.msra.mxu0 0
    %740 = vmatpush.bf16.msra.mxu0 0
    %741 = vmatpush.bf16.msra.mxu0 0
    %742 = vmatpush.bf16.msra.mxu0 0
    %743 = vmatpush.bf16.msra.mxu0 0
    %744 = vmatpush.bf16.msra.mxu0 %v732
    %745 = vmatpush.bf16.msra.mxu0 %v731
    %746 = vmatmul.bf16.gmra.mxu0 %v736
    %v747 = vpop.f32.mrf.mxu0
    %v748 = vadd.f32 %v721, %v747
    %v749 = vpop.f32.mrf.mxu0
    %v750 = vadd.f32 %v721, %v749
    %751 = vdwg.mxu0
    %v752 = vld [vmem:[#allocation7] sm:$0xf]
    %v753 = vld [vmem:[#allocation7 + $0x4] sm:$0xf]
    %v754 = vld [vmem:[#allocation9] sm:$0xf]
    %v755 = vld [vmem:[#allocation9 + $0x4] sm:$0xf]
    %v756 = vld [vmem:[#allocation9 + $0x8] sm:$0xf]
    %v757 = vld [vmem:[#allocation9 + $0xc] sm:$0xf]
    %v760 = vunpack.c.l.b16 %v752
    %v761 = vunpack.c.l.b16 %v753
    %v762 = vpack.c.b16 %v761, %v760
    %v767 = vunpack.c.l.b16 %v754
    %v768 = vunpack.c.l.b16 %v755
    %v769 = vunpack.c.l.b16 %v756
    %v770 = vunpack.c.l.b16 %v757
    %v771 = vpack.c.b16 %v768, %v767
    %v772 = vpack.c.b16 %v770, %v769
    %v776 = vsel %vm199, %v762, 0
    %778 = vmatpush.bf16.msra.mxu0 0
    %779 = vmatpush.bf16.msra.mxu0 0
    %780 = vmatpush.bf16.msra.mxu0 0
    %781 = vmatpush.bf16.msra.mxu0 0
    %782 = vmatpush.bf16.msra.mxu0 0
    %783 = vmatpush.bf16.msra.mxu0 0
    %784 = vmatpush.bf16.msra.mxu0 %v772
    %785 = vmatpush.bf16.msra.mxu0 %v771
    %786 = vmatmul.bf16.gmra.mxu0 %v776
    %v787 = vpop.f32.mrf.mxu0
    %v788 = vadd.f32 0.0, %v787
    %v789 = vpop.f32.mrf.mxu0
    %v790 = vadd.f32 0.0, %v789
    %791 = vdwg.mxu0
    %v792 = vmul.f32 %v788, -9999999.0
    %v793 = vmul.f32 %v790, -9999999.0
    %v794 = vadd.f32 %v748, %v792
    %v795 = vadd.f32 %v750, %v793
    %796 = vst [vmem:[#allocation16] sm:$0xff] %v794
    %797 = vst [vmem:[#allocation16 + $0x8] sm:$0xff] %v795
    // Predicated region
    $region70: #{tpu_custom_call.1} parent=1 // pred_check
      _
    $region71: #{tpu_custom_call.1} parent=1 // pred_check_branch
      %799 = sbr.rel (0) target = $region73
    $region72: #{tpu_custom_call.1} parent=1 // pred_region
      %801 = vsyncadd [#allocation6], 0
      %s802 = sshll.u32 [#allocation16], 4
      %s803 = int_to_ptr.vmem [resolvable:$true] %s802
      %s804 = sshll.u32 %s10, 4
      %s805 = int_to_ptr.hbm [resolvable:$true] %s804
      %810 = dma.vmem_to_hbm [thread:$0]  %s803, 256, %s805, [#allocation6], 128, 128, 8
    $region73: #{tpu_custom_call.1} parent=1 // pred_fallthru
      _
    // Predicated region
    $region74: #{tpu_custom_call.1} parent=1 // pred_check
      _
    $region75: #{tpu_custom_call.1} parent=1 // pred_check_branch
      %812 = sbr.rel (0) target = $region77
    $region76: #{tpu_custom_call.1} parent=1 // pred_region
      %814 = dma.done [#allocation6], 256
    $region77: #{tpu_custom_call.1} parent=1 // pred_fallthru
      _
    %815 = vsyncpa [#allocation5], 1
    %816 = vsyncpa [#allocation8], 1
    %817 = vsyncpa [#allocation11], 1
    %818 = vsyncpa [#allocation14], 1
    %819 = vsyncpa [#allocation6], 1

</llo_original>
